<compile_context>
chip_gen: v7x
topology: tpu7x:2x2x1
jax: 0.10.0
libtpu: 0.0.40
codegen_flags: <defaults>
</compile_context>

<pallas_src>
import jax
import jax.numpy as jnp
from jax.experimental import pallas as pl
from jax.experimental.pallas import tpu as pltpu

NUM_LAYERS = 10
_MAX_BATCH_TILE = 256  # rows of activation per grid step (multiple of 8)


def _chained_linear_kernel(x_ref, w_ref, b_ref, o_ref):
    """All 10 layers for one batch tile; activation stays a local value."""
    y = x_ref[...].astype(jnp.float32)                      # (BM, SP) f32 running activation
    for l in range(NUM_LAYERS):                             # static unroll: 10 back-to-back MXU matmuls
        y = jnp.dot(y.astype(jnp.bfloat16), w_ref[l],       # (BM,SP)@(SP,SP) bf16 -> f32
                    preferred_element_type=jnp.float32)
        y = y + b_ref[pl.ds(l, 1), :]                       # (1, SP) f32 bias row, broadcast
    o_ref[...] = y.astype(o_ref.dtype)


def some_module_forward(x, weights, biases):
    """x: (B, S); weights: (L, S, S) in PyTorch (out, in) layout; biases: (L, S).

    Matmul inputs are bf16 (MXU-native), accumulation and bias add are f32,
    output is rounded to x.dtype.
    """
    B, S = x.shape
    L = weights.shape[0]

    # Lane/sublane-dense padding: features -> multiple of 128, batch -> multiple of 8.
    SP = ((S + 127) // 128) * 128
    BP0 = ((B + 7) // 8) * 8
    if BP0 <= _MAX_BATCH_TILE:
        BM, BP = BP0, BP0
    else:
        BM = _MAX_BATCH_TILE
        BP = ((BP0 + BM - 1) // BM) * BM
    n_tiles = BP // BM

    # One-time layout prep outside the kernel:
    #   transpose (out,in)->(in,out), cast to bf16, zero-pad to lane-dense shapes.
    # Zero padding is exact: padded input columns are 0 and padded weight/bias
    # columns are 0, so padded output columns stay 0 through the whole chain.
    w_t = jnp.transpose(weights, (0, 2, 1)).astype(jnp.bfloat16)           # (L, in, out)
    w_p = jnp.zeros((L, SP, SP), jnp.bfloat16).at[:, :S, :S].set(w_t)
    b_p = jnp.zeros((L, SP), jnp.float32).at[:, :S].set(biases.astype(jnp.float32))
    x_p = jnp.zeros((BP, SP), jnp.bfloat16).at[:B, :S].set(x.astype(jnp.bfloat16))

    out_p = pl.pallas_call(
        _chained_linear_kernel,
        out_shape=jax.ShapeDtypeStruct((BP, SP), x.dtype),
        grid_spec=pl.GridSpec(
            grid=(n_tiles,),
            in_specs=[
                pl.BlockSpec((BM, SP), lambda i: (i, 0)),         # activation tile
                pl.BlockSpec((L, SP, SP), lambda i: (0, 0, 0)),   # all weights, resident
                pl.BlockSpec((L, SP), lambda i: (0, 0)),          # all biases, resident
            ],
            out_specs=pl.BlockSpec((BM, SP), lambda i: (i, 0)),
        ),
        compiler_params=pltpu.CompilerParams(
            dimension_semantics=("parallel",),
        ),
    )(x_p, w_p, b_p)

    return out_p[:B, :S]


def _reference_f32(x, weights, biases):
    """Pure f32 reference of the PyTorch module semantics."""
    y = x.astype(jnp.float32)
    for l in range(weights.shape[0]):
        y = y @ weights[l].T + biases[l]
    return y


def _reference_matched(x, weights, biases):
    """Reference matching the kernel's precision (bf16 matmul inputs, f32 accumulate)."""
    w_bf = jnp.transpose(weights, (0, 2, 1)).astype(jnp.bfloat16)
    b_f32 = biases.astype(jnp.float32)
    y = x.astype(jnp.float32)
    for l in range(w_bf.shape[0]):
        y = jnp.dot(y.astype(jnp.bfloat16), w_bf[l],
                    preferred_element_type=jnp.float32) + b_f32[l]
    return y


if __name__ == "__main__":
    SIZE = 32
    BATCH = 8

    key = jax.random.PRNGKey(0)
    kx, kw, kb = jax.random.split(key, 3)

    # Mirror nn.Linear default init: U(-1/sqrt(in), 1/sqrt(in))
    bound = 1.0 / jnp.sqrt(SIZE)
    weights = jax.random.uniform(
        kw, (NUM_LAYERS, SIZE, SIZE), jnp.float32, minval=-bound, maxval=bound
    )
    biases = jax.random.uniform(
        kb, (NUM_LAYERS, SIZE), jnp.float32, minval=-bound, maxval=bound
    )
    x = jax.random.normal(kx, (BATCH, SIZE), jnp.float32)

    out = jax.block_until_ready(some_module_forward(x, weights, biases))

    # Tight check vs. a reference computed at the kernel's precision.
    ref_matched = _reference_matched(x, weights, biases)
    assert jnp.allclose(out, ref_matched, atol=1e-3, rtol=1e-3), \
        "mismatch vs matched-precision reference"

    # Loose check vs. the pure-f32 module semantics (bf16 weight quantization
    # over 10 chained layers accounts for the tolerance).
    ref_f32 = _reference_f32(x, weights, biases).astype(x.dtype)
    assert jnp.allclose(out, ref_f32, atol=5e-2, rtol=5e-2), \
        "mismatch vs f32 reference"

    print("KERNEL_OK")
</pallas_src>

<mosaic_0001>
module attributes {stable_mosaic.version = 11 : i64} {
  func.func @_chained_linear_kernel(%arg0: i32, %arg1: memref<8x128xbf16, #tpu.memory_space<vmem>>, %arg2: memref<10x128x128xbf16, #tpu.memory_space<vmem>>, %arg3: memref<10x128xf32, #tpu.memory_space<vmem>>, %arg4: memref<8x128xf32, #tpu.memory_space<vmem>>) attributes {dimension_semantics = [#tpu.dimension_semantics<parallel>], iteration_bounds = array<i64: 1>, scalar_prefetch = 0 : i64, scratch_operands = 0 : i64, tpu.core_type = #tpu.core_type<tc>, window_params = [{transform_indices = @transform_0, window_bounds = array<i64: 8, 128>}, {pipeline_mode = #tpu.pipeline_mode<synchronous>, transform_indices = @transform_1, window_bounds = array<i64: 10, 128, 128>}, {pipeline_mode = #tpu.pipeline_mode<synchronous>, transform_indices = @transform_2, window_bounds = array<i64: 10, 128>}, {transform_indices = @transform_3, window_bounds = array<i64: 8, 128>}]} {
    %c0 = arith.constant 0 : index
    %c0_0 = arith.constant 0 : index
    %0 = vector.load %arg1[%c0, %c0_0] : memref<8x128xbf16, #tpu.memory_space<vmem>>, vector<8x128xbf16>
    %1 = arith.extf %0 : vector<8x128xbf16> to vector<8x128xf32>
    %2 = arith.truncf %1 : vector<8x128xf32> to vector<8x128xbf16>
    %c0_1 = arith.constant 0 : index
    %c0_2 = arith.constant 0 : index
    %c0_3 = arith.constant 0 : index
    %3 = vector.load %arg2[%c0_1, %c0_2, %c0_3] : memref<10x128x128xbf16, #tpu.memory_space<vmem>>, vector<1x128x128xbf16>
    %4 = vector.shape_cast %3 : vector<1x128x128xbf16> to vector<128x128xbf16>
    %cst = arith.constant dense<0.000000e+00> : vector<8x128xf32>
    %5 = tpu.matmul %2, %4, %cst {dimension_numbers = #tpu.dot_dimension_numbers<[1], [0], [0], [1], [0, 0, 1, 1], [], []>} : vector<8x128xbf16>, vector<128x128xbf16>, vector<8x128xf32> -> vector<8x128xf32>
    %c0_4 = arith.constant 0 : index
    %c0_5 = arith.constant 0 : index
    %6 = vector.load %arg3[%c0_4, %c0_5] : memref<10x128xf32, #tpu.memory_space<vmem>>, vector<1x128xf32>
    %7 = vector.broadcast %6 : vector<1x128xf32> to vector<8x128xf32>
    %8 = arith.addf %5, %7 : vector<8x128xf32>
    %9 = arith.truncf %8 : vector<8x128xf32> to vector<8x128xbf16>
    %c1 = arith.constant 1 : index
    %c0_6 = arith.constant 0 : index
    %c0_7 = arith.constant 0 : index
    %10 = vector.load %arg2[%c1, %c0_6, %c0_7] : memref<10x128x128xbf16, #tpu.memory_space<vmem>>, vector<1x128x128xbf16>
    %11 = vector.shape_cast %10 : vector<1x128x128xbf16> to vector<128x128xbf16>
    %cst_8 = arith.constant dense<0.000000e+00> : vector<8x128xf32>
    %12 = tpu.matmul %9, %11, %cst_8 {dimension_numbers = #tpu.dot_dimension_numbers<[1], [0], [0], [1], [0, 0, 1, 1], [], []>} : vector<8x128xbf16>, vector<128x128xbf16>, vector<8x128xf32> -> vector<8x128xf32>
    %c1_9 = arith.constant 1 : index
    %c0_10 = arith.constant 0 : index
    %13 = vector.load %arg3[%c1_9, %c0_10] : memref<10x128xf32, #tpu.memory_space<vmem>>, vector<1x128xf32>
    %14 = vector.broadcast %13 : vector<1x128xf32> to vector<8x128xf32>
    %15 = arith.addf %12, %14 : vector<8x128xf32>
    %16 = arith.truncf %15 : vector<8x128xf32> to vector<8x128xbf16>
    %c2 = arith.constant 2 : index
    %c0_11 = arith.constant 0 : index
    %c0_12 = arith.constant 0 : index
    %17 = vector.load %arg2[%c2, %c0_11, %c0_12] : memref<10x128x128xbf16, #tpu.memory_space<vmem>>, vector<1x128x128xbf16>
    %18 = vector.shape_cast %17 : vector<1x128x128xbf16> to vector<128x128xbf16>
    %cst_13 = arith.constant dense<0.000000e+00> : vector<8x128xf32>
    %19 = tpu.matmul %16, %18, %cst_13 {dimension_numbers = #tpu.dot_dimension_numbers<[1], [0], [0], [1], [0, 0, 1, 1], [], []>} : vector<8x128xbf16>, vector<128x128xbf16>, vector<8x128xf32> -> vector<8x128xf32>
    %c2_14 = arith.constant 2 : index
    %c0_15 = arith.constant 0 : index
    %20 = vector.load %arg3[%c2_14, %c0_15] : memref<10x128xf32, #tpu.memory_space<vmem>>, vector<1x128xf32>
    %21 = vector.broadcast %20 : vector<1x128xf32> to vector<8x128xf32>
    %22 = arith.addf %19, %21 : vector<8x128xf32>
    %23 = arith.truncf %22 : vector<8x128xf32> to vector<8x128xbf16>
    %c3 = arith.constant 3 : index
    %c0_16 = arith.constant 0 : index
    %c0_17 = arith.constant 0 : index
    %24 = vector.load %arg2[%c3, %c0_16, %c0_17] : memref<10x128x128xbf16, #tpu.memory_space<vmem>>, vector<1x128x128xbf16>
    %25 = vector.shape_cast %24 : vector<1x128x128xbf16> to vector<128x128xbf16>
    %cst_18 = arith.constant dense<0.000000e+00> : vector<8x128xf32>
    %26 = tpu.matmul %23, %25, %cst_18 {dimension_numbers = #tpu.dot_dimension_numbers<[1], [0], [0], [1], [0, 0, 1, 1], [], []>} : vector<8x128xbf16>, vector<128x128xbf16>, vector<8x128xf32> -> vector<8x128xf32>
    %c3_19 = arith.constant 3 : index
    %c0_20 = arith.constant 0 : index
    %27 = vector.load %arg3[%c3_19, %c0_20] : memref<10x128xf32, #tpu.memory_space<vmem>>, vector<1x128xf32>
    %28 = vector.broadcast %27 : vector<1x128xf32> to vector<8x128xf32>
    %29 = arith.addf %26, %28 : vector<8x128xf32>
    %30 = arith.truncf %29 : vector<8x128xf32> to vector<8x128xbf16>
    %c4 = arith.constant 4 : index
    %c0_21 = arith.constant 0 : index
    %c0_22 = arith.constant 0 : index
    %31 = vector.load %arg2[%c4, %c0_21, %c0_22] : memref<10x128x128xbf16, #tpu.memory_space<vmem>>, vector<1x128x128xbf16>
    %32 = vector.shape_cast %31 : vector<1x128x128xbf16> to vector<128x128xbf16>
    %cst_23 = arith.constant dense<0.000000e+00> : vector<8x128xf32>
    %33 = tpu.matmul %30, %32, %cst_23 {dimension_numbers = #tpu.dot_dimension_numbers<[1], [0], [0], [1], [0, 0, 1, 1], [], []>} : vector<8x128xbf16>, vector<128x128xbf16>, vector<8x128xf32> -> vector<8x128xf32>
    %c4_24 = arith.constant 4 : index
    %c0_25 = arith.constant 0 : index
    %34 = vector.load %arg3[%c4_24, %c0_25] : memref<10x128xf32, #tpu.memory_space<vmem>>, vector<1x128xf32>
    %35 = vector.broadcast %34 : vector<1x128xf32> to vector<8x128xf32>
    %36 = arith.addf %33, %35 : vector<8x128xf32>
    %37 = arith.truncf %36 : vector<8x128xf32> to vector<8x128xbf16>
    %c5 = arith.constant 5 : index
    %c0_26 = arith.constant 0 : index
    %c0_27 = arith.constant 0 : index
    %38 = vector.load %arg2[%c5, %c0_26, %c0_27] : memref<10x128x128xbf16, #tpu.memory_space<vmem>>, vector<1x128x128xbf16>
    %39 = vector.shape_cast %38 : vector<1x128x128xbf16> to vector<128x128xbf16>
    %cst_28 = arith.constant dense<0.000000e+00> : vector<8x128xf32>
    %40 = tpu.matmul %37, %39, %cst_28 {dimension_numbers = #tpu.dot_dimension_numbers<[1], [0], [0], [1], [0, 0, 1, 1], [], []>} : vector<8x128xbf16>, vector<128x128xbf16>, vector<8x128xf32> -> vector<8x128xf32>
    %c5_29 = arith.constant 5 : index
    %c0_30 = arith.constant 0 : index
    %41 = vector.load %arg3[%c5_29, %c0_30] : memref<10x128xf32, #tpu.memory_space<vmem>>, vector<1x128xf32>
    %42 = vector.broadcast %41 : vector<1x128xf32> to vector<8x128xf32>
    %43 = arith.addf %40, %42 : vector<8x128xf32>
    %44 = arith.truncf %43 : vector<8x128xf32> to vector<8x128xbf16>
    %c6 = arith.constant 6 : index
    %c0_31 = arith.constant 0 : index
    %c0_32 = arith.constant 0 : index
    %45 = vector.load %arg2[%c6, %c0_31, %c0_32] : memref<10x128x128xbf16, #tpu.memory_space<vmem>>, vector<1x128x128xbf16>
    %46 = vector.shape_cast %45 : vector<1x128x128xbf16> to vector<128x128xbf16>
    %cst_33 = arith.constant dense<0.000000e+00> : vector<8x128xf32>
    %47 = tpu.matmul %44, %46, %cst_33 {dimension_numbers = #tpu.dot_dimension_numbers<[1], [0], [0], [1], [0, 0, 1, 1], [], []>} : vector<8x128xbf16>, vector<128x128xbf16>, vector<8x128xf32> -> vector<8x128xf32>
    %c6_34 = arith.constant 6 : index
    %c0_35 = arith.constant 0 : index
    %48 = vector.load %arg3[%c6_34, %c0_35] : memref<10x128xf32, #tpu.memory_space<vmem>>, vector<1x128xf32>
    %49 = vector.broadcast %48 : vector<1x128xf32> to vector<8x128xf32>
    %50 = arith.addf %47, %49 : vector<8x128xf32>
    %51 = arith.truncf %50 : vector<8x128xf32> to vector<8x128xbf16>
    %c7 = arith.constant 7 : index
    %c0_36 = arith.constant 0 : index
    %c0_37 = arith.constant 0 : index
    %52 = vector.load %arg2[%c7, %c0_36, %c0_37] : memref<10x128x128xbf16, #tpu.memory_space<vmem>>, vector<1x128x128xbf16>
    %53 = vector.shape_cast %52 : vector<1x128x128xbf16> to vector<128x128xbf16>
    %cst_38 = arith.constant dense<0.000000e+00> : vector<8x128xf32>
    %54 = tpu.matmul %51, %53, %cst_38 {dimension_numbers = #tpu.dot_dimension_numbers<[1], [0], [0], [1], [0, 0, 1, 1], [], []>} : vector<8x128xbf16>, vector<128x128xbf16>, vector<8x128xf32> -> vector<8x128xf32>
    %c7_39 = arith.constant 7 : index
    %c0_40 = arith.constant 0 : index
    %55 = vector.load %arg3[%c7_39, %c0_40] : memref<10x128xf32, #tpu.memory_space<vmem>>, vector<1x128xf32>
    %56 = vector.broadcast %55 : vector<1x128xf32> to vector<8x128xf32>
    %57 = arith.addf %54, %56 : vector<8x128xf32>
    %58 = arith.truncf %57 : vector<8x128xf32> to vector<8x128xbf16>
    %c8 = arith.constant 8 : index
    %c0_41 = arith.constant 0 : index
    %c0_42 = arith.constant 0 : index
    %59 = vector.load %arg2[%c8, %c0_41, %c0_42] : memref<10x128x128xbf16, #tpu.memory_space<vmem>>, vector<1x128x128xbf16>
    %60 = vector.shape_cast %59 : vector<1x128x128xbf16> to vector<128x128xbf16>
    %cst_43 = arith.constant dense<0.000000e+00> : vector<8x128xf32>
    %61 = tpu.matmul %58, %60, %cst_43 {dimension_numbers = #tpu.dot_dimension_numbers<[1], [0], [0], [1], [0, 0, 1, 1], [], []>} : vector<8x128xbf16>, vector<128x128xbf16>, vector<8x128xf32> -> vector<8x128xf32>
    %c8_44 = arith.constant 8 : index
    %c0_45 = arith.constant 0 : index
    %62 = vector.load %arg3[%c8_44, %c0_45] : memref<10x128xf32, #tpu.memory_space<vmem>>, vector<1x128xf32>
    %63 = vector.broadcast %62 : vector<1x128xf32> to vector<8x128xf32>
    %64 = arith.addf %61, %63 : vector<8x128xf32>
    %65 = arith.truncf %64 : vector<8x128xf32> to vector<8x128xbf16>
    %c9 = arith.constant 9 : index
    %c0_46 = arith.constant 0 : index
    %c0_47 = arith.constant 0 : index
    %66 = vector.load %arg2[%c9, %c0_46, %c0_47] : memref<10x128x128xbf16, #tpu.memory_space<vmem>>, vector<1x128x128xbf16>
    %67 = vector.shape_cast %66 : vector<1x128x128xbf16> to vector<128x128xbf16>
    %cst_48 = arith.constant dense<0.000000e+00> : vector<8x128xf32>
    %68 = tpu.matmul %65, %67, %cst_48 {dimension_numbers = #tpu.dot_dimension_numbers<[1], [0], [0], [1], [0, 0, 1, 1], [], []>} : vector<8x128xbf16>, vector<128x128xbf16>, vector<8x128xf32> -> vector<8x128xf32>
    %c9_49 = arith.constant 9 : index
    %c0_50 = arith.constant 0 : index
    %69 = vector.load %arg3[%c9_49, %c0_50] : memref<10x128xf32, #tpu.memory_space<vmem>>, vector<1x128xf32>
    %70 = vector.broadcast %69 : vector<1x128xf32> to vector<8x128xf32>
    %71 = arith.addf %68, %70 : vector<8x128xf32>
    %c0_51 = arith.constant 0 : index
    %c0_52 = arith.constant 0 : index
    %72 = vector.load %arg4[%c0_51, %c0_52] : memref<8x128xf32, #tpu.memory_space<vmem>>, vector<8x128xf32>
    tpu.vector_store %arg4[%c0_51, %c0_52], %71 {strides = array<i32>} : memref<8x128xf32, #tpu.memory_space<vmem>>, vector<8x128xf32>,
    return
  }
  func.func @transform_0(%arg0: i32) -> (i32, i32) {
    %c0_i32 = arith.constant 0 : i32
    %c0_i32_0 = arith.constant 0 : i32
    return %arg0, %c0_i32 : i32, i32
  }
  func.func @transform_1(%arg0: i32) -> (i32, i32, i32) {
    %c0_i32 = arith.constant 0 : i32
    %c0_i32_0 = arith.constant 0 : i32
    %c0_i32_1 = arith.constant 0 : i32
    %c0_i32_2 = arith.constant 0 : i32
    return %c0_i32, %c0_i32_0, %c0_i32_1 : i32, i32, i32
  }
  func.func @transform_2(%arg0: i32) -> (i32, i32) {
    %c0_i32 = arith.constant 0 : i32
    %c0_i32_0 = arith.constant 0 : i32
    %c0_i32_1 = arith.constant 0 : i32
    return %c0_i32, %c0_i32_0 : i32, i32
  }
  func.func @transform_3(%arg0: i32) -> (i32, i32) {
    %c0_i32 = arith.constant 0 : i32
    %c0_i32_0 = arith.constant 0 : i32
    return %arg0, %c0_i32 : i32, i32
  }
}

</mosaic_0001>

<llo_original>
// kernel: tpu_custom_call.1
$region0: #{tpu_custom_call.1}
  #allocation0 [shape = 'u32[]', space=smem, size = 0x4, offset = 0x4, fixed_abs, tag = 'smem constant byte address 0x4 - core index']
  #allocation1 [shape = 'u32[144,128]{1,0:T(1,128)}', space=vmem, size = 0x12000, scoped, tag = 'internal scratch']
  %s0 = inlined_call_operand.hbm [shape: bf16[8,128], index: 0, kind: input, shape index: {}]
  %s1 = inlined_call_operand.hbm [shape: bf16[10,128,128], index: 1, kind: input, shape index: {}]
  %s2 = inlined_call_operand.hbm [shape: f32[10,128], index: 2, kind: input, shape index: {}]
  %s3 = inlined_call_operand.hbm [shape: f32[8,128], index: 3, kind: output, shape index: {}]
  %s4 = sld [smem:[#allocation0]]
  $region34: #{tpu_custom_call.1} parent=0
    _
  %s6 = ssub.s32 1, %s4
  %s7 = scalar_select 0, %s6, %s4
  $region1: #{tpu_custom_call.1} parent=0
    #allocation2 [shape = 'u8[2048]{0}', space=vmem, size = 0x800, scoped, tag = 'input window, operand 0, single buffered']
    #allocation3 [shape = 's32[1]{0}', space=sflag, size = 0x4, scoped, tag = 'scoped memory for tpu_custom_call.1']
    #allocation4 [shape = 's32[1]{0}', space=sflag, size = 0x4, scoped, tag = 'scoped memory for tpu_custom_call.1']
    #allocation5 [shape = 'u8[327680]{0}', space=vmem, size = 0x50000, scoped, tag = 'input window, operand 1, single buffered']
    #allocation6 [shape = 's32[1]{0}', space=sflag, size = 0x4, scoped, tag = 'scoped memory for tpu_custom_call.1']
    #allocation7 [shape = 'u8[8192]{0}', space=vmem, size = 0x2000, scoped, tag = 'input window, operand 2, single buffered']
    #allocation8 [shape = 'u8[4096]{0}', space=vmem, size = 0x1000, scoped, tag = 'output window, operand 0, single buffered']
    %8 = vsyncpa [#allocation3], 0
    %9 = vsyncpa [#allocation6], 0
    %10 = vsyncpa [#allocation4], 0
    // Predicated region
    $region2: #{tpu_custom_call.1} parent=1 // pred_check
      _
    $region3: #{tpu_custom_call.1} parent=1 // pred_check_branch
      %12 = sbr.rel (0) target = $region5
    $region4: #{tpu_custom_call.1} parent=1 // pred_region
      %s14 = ssub.s32 64, 64
      %15 = vsyncadd [#allocation3], %s14
      %s17 = sshll.u32 [#allocation2], 4
      %s18 = int_to_ptr.vmem [resolvable:$true] %s17
      %20 = dma.hbm_to_vmem [thread:$0]  %s0, 64, %s18, [#allocation3]
    $region5: #{tpu_custom_call.1} parent=1 // pred_fallthru
      _
    // Predicated region
    $region6: #{tpu_custom_call.1} parent=1 // pred_check
      _
    $region7: #{tpu_custom_call.1} parent=1 // pred_check_branch
      %22 = sbr.rel (0) target = $region9
    $region8: #{tpu_custom_call.1} parent=1 // pred_region
      %s24 = ssub.s32 10240, 10240
      %25 = vsyncadd [#allocation6], %s24
      %s26 = sshll.u32 [#allocation5], 4
      %s27 = int_to_ptr.vmem [resolvable:$true] %s26
      %32 = dma.hbm_to_vmem [thread:$0]  %s1, 10240, %s27, [#allocation6], 64, 64, 4
    $region9: #{tpu_custom_call.1} parent=1 // pred_fallthru
      _
    // Predicated region
    $region10: #{tpu_custom_call.1} parent=1 // pred_check
      _
    $region11: #{tpu_custom_call.1} parent=1 // pred_check_branch
      %34 = sbr.rel (0) target = $region13
    $region12: #{tpu_custom_call.1} parent=1 // pred_region
      %s36 = ssub.s32 256, 256
      %37 = vsyncadd [#allocation6], %s36
      %s38 = sshll.u32 [#allocation7], 4
      %s39 = int_to_ptr.vmem [resolvable:$true] %s38
      %44 = dma.hbm_to_vmem [thread:$0]  %s2, 256, %s39, [#allocation6], 128, 128, 8
    $region13: #{tpu_custom_call.1} parent=1 // pred_fallthru
      _
    // Predicated region
    $region14: #{tpu_custom_call.1} parent=1 // pred_check
      _
    $region15: #{tpu_custom_call.1} parent=1 // pred_check_branch
      %46 = sbr.rel (0) target = $region17
    $region16: #{tpu_custom_call.1} parent=1 // pred_region
      %47 = dma.done [#allocation3], 64
    $region17: #{tpu_custom_call.1} parent=1 // pred_fallthru
      _
    // Predicated region
    $region18: #{tpu_custom_call.1} parent=1 // pred_check
      _
    $region19: #{tpu_custom_call.1} parent=1 // pred_check_branch
      %49 = sbr.rel (0) target = $region21
    $region20: #{tpu_custom_call.1} parent=1 // pred_region
      %50 = dma.done [#allocation6], 10240
    $region21: #{tpu_custom_call.1} parent=1 // pred_fallthru
      _
    // Predicated region
    $region22: #{tpu_custom_call.1} parent=1 // pred_check
      _
    $region23: #{tpu_custom_call.1} parent=1 // pred_check_branch
      %52 = sbr.rel (0) target = $region25
    $region24: #{tpu_custom_call.1} parent=1 // pred_region
      %53 = dma.done [#allocation6], 256
    $region25: #{tpu_custom_call.1} parent=1 // pred_fallthru
      _
    %v55 = vld [vmem:[#allocation2] sm:$0xf]
    %v56 = vld [vmem:[#allocation5] sm:$0xf]
    %v57 = vld [vmem:[#allocation5 + $0x4] sm:$0xf]
    %v58 = vld [vmem:[#allocation5 + $0x8] sm:$0xf]
    %v59 = vld [vmem:[#allocation5 + $0xc] sm:$0xf]
    %v60 = vld [vmem:[#allocation5 + $0x10] sm:$0xf]
    %v61 = vld [vmem:[#allocation5 + $0x14] sm:$0xf]
    %v62 = vld [vmem:[#allocation5 + $0x18] sm:$0xf]
    %v63 = vld [vmem:[#allocation5 + $0x1c] sm:$0xf]
    %v64 = vld [vmem:[#allocation5 + $0x20] sm:$0xf]
    %v65 = vld [vmem:[#allocation5 + $0x24] sm:$0xf]
    %v66 = vld [vmem:[#allocation5 + $0x28] sm:$0xf]
    %v67 = vld [vmem:[#allocation5 + $0x2c] sm:$0xf]
    %v68 = vld [vmem:[#allocation5 + $0x30] sm:$0xf]
    %v69 = vld [vmem:[#allocation5 + $0x34] sm:$0xf]
    %v70 = vld [vmem:[#allocation5 + $0x38] sm:$0xf]
    %v71 = vld [vmem:[#allocation5 + $0x3c] sm:$0xf]
    %v72 = vld [vmem:[#allocation7] sm:$0x1]
    %v73 = vlaneseq
    %v74 = vshrl.u32 %v73, 7
    %v75 = vsub.s32 0, %v74
    %v76 = vrot.slane %v72, %v75
    %v93 = vunpack.c.l.b16 %v56
    %v94 = vunpack.c.l.b16 %v57
    %v95 = vunpack.c.l.b16 %v58
    %v96 = vunpack.c.l.b16 %v59
    %v97 = vunpack.c.l.b16 %v60
    %v98 = vunpack.c.l.b16 %v61
    %v99 = vunpack.c.l.b16 %v62
    %v100 = vunpack.c.l.b16 %v63
    %v101 = vunpack.c.l.b16 %v64
    %v102 = vunpack.c.l.b16 %v65
    %v103 = vunpack.c.l.b16 %v66
    %v104 = vunpack.c.l.b16 %v67
    %v105 = vunpack.c.l.b16 %v68
    %v106 = vunpack.c.l.b16 %v69
    %v107 = vunpack.c.l.b16 %v70
    %v108 = vunpack.c.l.b16 %v71
    %v109 = vpack.c.b16 %v94, %v93
    %v110 = vpack.c.b16 %v96, %v95
    %v111 = vpack.c.b16 %v98, %v97
    %v112 = vpack.c.b16 %v100, %v99
    %v113 = vpack.c.b16 %v102, %v101
    %v114 = vpack.c.b16 %v104, %v103
    %v115 = vpack.c.b16 %v106, %v105
    %v116 = vpack.c.b16 %v108, %v107
    %125 = vmatprep.subr.bf16.mxu0 0
    %126 = vmatpush1.bf16.msra.mxu0 %v109
    %127 = vmatprep.subr.bf16.mxu0 0
    %128 = vmatpush1.bf16.msra.mxu0 %v110
    %129 = vmatprep.subr.bf16.mxu0 0
    %130 = vmatpush1.bf16.msra.mxu0 %v111
    %131 = vmatprep.subr.bf16.mxu0 0
    %132 = vmatpush1.bf16.msra.mxu0 %v112
    %133 = vmatprep.subr.bf16.mxu0 0
    %134 = vmatpush1.bf16.msra.mxu0 %v113
    %135 = vmatprep.subr.bf16.mxu0 0
    %136 = vmatpush1.bf16.msra.mxu0 %v114
    %137 = vmatprep.subr.bf16.mxu0 0
    %138 = vmatpush1.bf16.msra.mxu0 %v115
    %139 = vmatprep.subr.bf16.mxu0 0
    %140 = vmatpush1.bf16.msra.mxu0 %v116
    %141 = vmatprep.subr.bf16.mxu0 0
    %142 = vmatpush1.bf16.msra.mxu0 0
    %143 = vmatprep.subr.bf16.mxu0 0
    %144 = vmatpush1.bf16.msra.mxu0 0
    %145 = vmatprep.subr.bf16.mxu0 0
    %146 = vmatpush1.bf16.msra.mxu0 0
    %147 = vmatprep.subr.bf16.mxu0 0
    %148 = vmatpush1.bf16.msra.mxu0 0
    %149 = vmatprep.subr.bf16.mxu0 0
    %150 = vmatpush1.bf16.msra.mxu0 0
    %151 = vmatprep.subr.bf16.mxu0 0
    %152 = vmatpush1.bf16.msra.mxu0 0
    %153 = vmatprep.subr.bf16.mxu0 0
    %154 = vmatpush1.bf16.msra.mxu0 0
    %155 = vmatprep.subr.bf16.mxu0 0
    %156 = vmatpush1.bf16.msra.mxu0 0
    %157 = vmatprep.mubr.bf16.mxu0 0
    %158 = vmatmul.mubr.bf16.gmra.mrb[0].mxu0 %v55
    %v159 = vpop.f32.mrb[0].mxu0
    %v160 = vadd.f32 %v76, %v159
    %v161 = vpop.f32.mrb[0].mxu0
    %v162 = vpop.f32.mrb[0].mxu0
    %v163 = vpop.f32.mrb[0].mxu0
    %164 = vdwg.mxu0
    %v165 = vpack.c.bf16 %v160, %v160
    %s166 = scalar_lea.vmem [#allocation5], 64
    %v167 = vld [vmem:[%s166] sm:$0xf]
    %v168 = vld [vmem:[%s166 + $0x4] sm:$0xf]
    %v169 = vld [vmem:[%s166 + $0x8] sm:$0xf]
    %v170 = vld [vmem:[%s166 + $0xc] sm:$0xf]
    %v171 = vld [vmem:[%s166 + $0x10] sm:$0xf]
    %v172 = vld [vmem:[%s166 + $0x14] sm:$0xf]
    %v173 = vld [vmem:[%s166 + $0x18] sm:$0xf]
    %v174 = vld [vmem:[%s166 + $0x1c] sm:$0xf]
    %v175 = vld [vmem:[%s166 + $0x20] sm:$0xf]
    %v176 = vld [vmem:[%s166 + $0x24] sm:$0xf]
    %v177 = vld [vmem:[%s166 + $0x28] sm:$0xf]
    %v178 = vld [vmem:[%s166 + $0x2c] sm:$0xf]
    %v179 = vld [vmem:[%s166 + $0x30] sm:$0xf]
    %v180 = vld [vmem:[%s166 + $0x34] sm:$0xf]
    %v181 = vld [vmem:[%s166 + $0x38] sm:$0xf]
    %v182 = vld [vmem:[%s166 + $0x3c] sm:$0xf]
    %v183 = vld [vmem:[#allocation7 + $0x1] sm:$0x1]
    %v184 = vlaneseq
    %v185 = vshrl.u32 %v184, 7
    %v186 = vsub.s32 0, %v185
    %v187 = vrot.slane %v183, %v186
    %v204 = vunpack.c.l.b16 %v167
    %v205 = vunpack.c.l.b16 %v168
    %v206 = vunpack.c.l.b16 %v169
    %v207 = vunpack.c.l.b16 %v170
    %v208 = vunpack.c.l.b16 %v171
    %v209 = vunpack.c.l.b16 %v172
    %v210 = vunpack.c.l.b16 %v173
    %v211 = vunpack.c.l.b16 %v174
    %v212 = vunpack.c.l.b16 %v175
    %v213 = vunpack.c.l.b16 %v176
    %v214 = vunpack.c.l.b16 %v177
    %v215 = vunpack.c.l.b16 %v178
    %v216 = vunpack.c.l.b16 %v179
    %v217 = vunpack.c.l.b16 %v180
    %v218 = vunpack.c.l.b16 %v181
    %v219 = vunpack.c.l.b16 %v182
    %v220 = vpack.c.b16 %v205, %v204
    %v221 = vpack.c.b16 %v207, %v206
    %v222 = vpack.c.b16 %v209, %v208
    %v223 = vpack.c.b16 %v211, %v210
    %v224 = vpack.c.b16 %v213, %v212
    %v225 = vpack.c.b16 %v215, %v214
    %v226 = vpack.c.b16 %v217, %v216
    %v227 = vpack.c.b16 %v219, %v218
    %236 = vmatprep.subr.bf16.mxu0 0
    %237 = vmatpush1.bf16.msra.mxu0 %v220
    %238 = vmatprep.subr.bf16.mxu0 0
    %239 = vmatpush1.bf16.msra.mxu0 %v221
    %240 = vmatprep.subr.bf16.mxu0 0
    %241 = vmatpush1.bf16.msra.mxu0 %v222
    %242 = vmatprep.subr.bf16.mxu0 0
    %243 = vmatpush1.bf16.msra.mxu0 %v223
    %244 = vmatprep.subr.bf16.mxu0 0
    %245 = vmatpush1.bf16.msra.mxu0 %v224
    %246 = vmatprep.subr.bf16.mxu0 0
    %247 = vmatpush1.bf16.msra.mxu0 %v225
    %248 = vmatprep.subr.bf16.mxu0 0
    %249 = vmatpush1.bf16.msra.mxu0 %v226
    %250 = vmatprep.subr.bf16.mxu0 0
    %251 = vmatpush1.bf16.msra.mxu0 %v227
    %252 = vmatprep.subr.bf16.mxu0 0
    %253 = vmatpush1.bf16.msra.mxu0 0
    %254 = vmatprep.subr.bf16.mxu0 0
    %255 = vmatpush1.bf16.msra.mxu0 0
    %256 = vmatprep.subr.bf16.mxu0 0
    %257 = vmatpush1.bf16.msra.mxu0 0
    %258 = vmatprep.subr.bf16.mxu0 0
    %259 = vmatpush1.bf16.msra.mxu0 0
    %260 = vmatprep.subr.bf16.mxu0 0
    %261 = vmatpush1.bf16.msra.mxu0 0
    %262 = vmatprep.subr.bf16.mxu0 0
    %263 = vmatpush1.bf16.msra.mxu0 0
    %264 = vmatprep.subr.bf16.mxu0 0
    %265 = vmatpush1.bf16.msra.mxu0 0
    %266 = vmatprep.subr.bf16.mxu0 0
    %267 = vmatpush1.bf16.msra.mxu0 0
    %268 = vmatprep.mubr.bf16.mxu0 0
    %269 = vmatmul.mubr.bf16.gmra.mrb[0].mxu0 %v165
    %v270 = vpop.f32.mrb[0].mxu0
    %v271 = vadd.f32 %v187, %v270
    %v272 = vpop.f32.mrb[0].mxu0
    %v273 = vpop.f32.mrb[0].mxu0
    %v274 = vpop.f32.mrb[0].mxu0
    %275 = vdwg.mxu0
    %v276 = vpack.c.bf16 %v271, %v271
    %s277 = scalar_lea.vmem [#allocation5], 128
    %v278 = vld [vmem:[%s277] sm:$0xf]
    %v279 = vld [vmem:[%s277 + $0x4] sm:$0xf]
    %v280 = vld [vmem:[%s277 + $0x8] sm:$0xf]
    %v281 = vld [vmem:[%s277 + $0xc] sm:$0xf]
    %v282 = vld [vmem:[%s277 + $0x10] sm:$0xf]
    %v283 = vld [vmem:[%s277 + $0x14] sm:$0xf]
    %v284 = vld [vmem:[%s277 + $0x18] sm:$0xf]
    %v285 = vld [vmem:[%s277 + $0x1c] sm:$0xf]
    %v286 = vld [vmem:[%s277 + $0x20] sm:$0xf]
    %v287 = vld [vmem:[%s277 + $0x24] sm:$0xf]
    %v288 = vld [vmem:[%s277 + $0x28] sm:$0xf]
    %v289 = vld [vmem:[%s277 + $0x2c] sm:$0xf]
    %v290 = vld [vmem:[%s277 + $0x30] sm:$0xf]
    %v291 = vld [vmem:[%s277 + $0x34] sm:$0xf]
    %v292 = vld [vmem:[%s277 + $0x38] sm:$0xf]
    %v293 = vld [vmem:[%s277 + $0x3c] sm:$0xf]
    %v294 = vld [vmem:[#allocation7 + $0x2] sm:$0x1]
    %v295 = vlaneseq
    %v296 = vshrl.u32 %v295, 7
    %v297 = vsub.s32 0, %v296
    %v298 = vrot.slane %v294, %v297
    %v315 = vunpack.c.l.b16 %v278
    %v316 = vunpack.c.l.b16 %v279
    %v317 = vunpack.c.l.b16 %v280
    %v318 = vunpack.c.l.b16 %v281
    %v319 = vunpack.c.l.b16 %v282
    %v320 = vunpack.c.l.b16 %v283
    %v321 = vunpack.c.l.b16 %v284
    %v322 = vunpack.c.l.b16 %v285
    %v323 = vunpack.c.l.b16 %v286
    %v324 = vunpack.c.l.b16 %v287
    %v325 = vunpack.c.l.b16 %v288
    %v326 = vunpack.c.l.b16 %v289
    %v327 = vunpack.c.l.b16 %v290
    %v328 = vunpack.c.l.b16 %v291
    %v329 = vunpack.c.l.b16 %v292
    %v330 = vunpack.c.l.b16 %v293
    %v331 = vpack.c.b16 %v316, %v315
    %v332 = vpack.c.b16 %v318, %v317
    %v333 = vpack.c.b16 %v320, %v319
    %v334 = vpack.c.b16 %v322, %v321
    %v335 = vpack.c.b16 %v324, %v323
    %v336 = vpack.c.b16 %v326, %v325
    %v337 = vpack.c.b16 %v328, %v327
    %v338 = vpack.c.b16 %v330, %v329
    %347 = vmatprep.subr.bf16.mxu0 0
    %348 = vmatpush1.bf16.msra.mxu0 %v331
    %349 = vmatprep.subr.bf16.mxu0 0
    %350 = vmatpush1.bf16.msra.mxu0 %v332
    %351 = vmatprep.subr.bf16.mxu0 0
    %352 = vmatpush1.bf16.msra.mxu0 %v333
    %353 = vmatprep.subr.bf16.mxu0 0
    %354 = vmatpush1.bf16.msra.mxu0 %v334
    %355 = vmatprep.subr.bf16.mxu0 0
    %356 = vmatpush1.bf16.msra.mxu0 %v335
    %357 = vmatprep.subr.bf16.mxu0 0
    %358 = vmatpush1.bf16.msra.mxu0 %v336
    %359 = vmatprep.subr.bf16.mxu0 0
    %360 = vmatpush1.bf16.msra.mxu0 %v337
    %361 = vmatprep.subr.bf16.mxu0 0
    %362 = vmatpush1.bf16.msra.mxu0 %v338
    %363 = vmatprep.subr.bf16.mxu0 0
    %364 = vmatpush1.bf16.msra.mxu0 0
    %365 = vmatprep.subr.bf16.mxu0 0
    %366 = vmatpush1.bf16.msra.mxu0 0
    %367 = vmatprep.subr.bf16.mxu0 0
    %368 = vmatpush1.bf16.msra.mxu0 0
    %369 = vmatprep.subr.bf16.mxu0 0
    %370 = vmatpush1.bf16.msra.mxu0 0
    %371 = vmatprep.subr.bf16.mxu0 0
    %372 = vmatpush1.bf16.msra.mxu0 0
    %373 = vmatprep.subr.bf16.mxu0 0
    %374 = vmatpush1.bf16.msra.mxu0 0
    %375 = vmatprep.subr.bf16.mxu0 0
    %376 = vmatpush1.bf16.msra.mxu0 0
    %377 = vmatprep.subr.bf16.mxu0 0
    %378 = vmatpush1.bf16.msra.mxu0 0
    %379 = vmatprep.mubr.bf16.mxu0 0
    %380 = vmatmul.mubr.bf16.gmra.mrb[0].mxu0 %v276
    %v381 = vpop.f32.mrb[0].mxu0
    %v382 = vadd.f32 %v298, %v381
    %v383 = vpop.f32.mrb[0].mxu0
    %v384 = vpop.f32.mrb[0].mxu0
    %v385 = vpop.f32.mrb[0].mxu0
    %386 = vdwg.mxu0
    %v387 = vpack.c.bf16 %v382, %v382
    %s388 = scalar_lea.vmem [#allocation5], 192
    %v389 = vld [vmem:[%s388] sm:$0xf]
    %v390 = vld [vmem:[%s388 + $0x4] sm:$0xf]
    %v391 = vld [vmem:[%s388 + $0x8] sm:$0xf]
    %v392 = vld [vmem:[%s388 + $0xc] sm:$0xf]
    %v393 = vld [vmem:[%s388 + $0x10] sm:$0xf]
    %v394 = vld [vmem:[%s388 + $0x14] sm:$0xf]
    %v395 = vld [vmem:[%s388 + $0x18] sm:$0xf]
    %v396 = vld [vmem:[%s388 + $0x1c] sm:$0xf]
    %v397 = vld [vmem:[%s388 + $0x20] sm:$0xf]
    %v398 = vld [vmem:[%s388 + $0x24] sm:$0xf]
    %v399 = vld [vmem:[%s388 + $0x28] sm:$0xf]
    %v400 = vld [vmem:[%s388 + $0x2c] sm:$0xf]
    %v401 = vld [vmem:[%s388 + $0x30] sm:$0xf]
    %v402 = vld [vmem:[%s388 + $0x34] sm:$0xf]
    %v403 = vld [vmem:[%s388 + $0x38] sm:$0xf]
    %v404 = vld [vmem:[%s388 + $0x3c] sm:$0xf]
    %v405 = vld [vmem:[#allocation7 + $0x3] sm:$0x1]
    %v406 = vlaneseq
    %v407 = vshrl.u32 %v406, 7
    %v408 = vsub.s32 0, %v407
    %v409 = vrot.slane %v405, %v408
    %v426 = vunpack.c.l.b16 %v389
    %v427 = vunpack.c.l.b16 %v390
    %v428 = vunpack.c.l.b16 %v391
    %v429 = vunpack.c.l.b16 %v392
    %v430 = vunpack.c.l.b16 %v393
    %v431 = vunpack.c.l.b16 %v394
    %v432 = vunpack.c.l.b16 %v395
    %v433 = vunpack.c.l.b16 %v396
    %v434 = vunpack.c.l.b16 %v397
    %v435 = vunpack.c.l.b16 %v398
    %v436 = vunpack.c.l.b16 %v399
    %v437 = vunpack.c.l.b16 %v400
    %v438 = vunpack.c.l.b16 %v401
    %v439 = vunpack.c.l.b16 %v402
    %v440 = vunpack.c.l.b16 %v403
    %v441 = vunpack.c.l.b16 %v404
    %v442 = vpack.c.b16 %v427, %v426
    %v443 = vpack.c.b16 %v429, %v428
    %v444 = vpack.c.b16 %v431, %v430
    %v445 = vpack.c.b16 %v433, %v432
    %v446 = vpack.c.b16 %v435, %v434
    %v447 = vpack.c.b16 %v437, %v436
    %v448 = vpack.c.b16 %v439, %v438
    %v449 = vpack.c.b16 %v441, %v440
    %458 = vmatprep.subr.bf16.mxu0 0
    %459 = vmatpush1.bf16.msra.mxu0 %v442
    %460 = vmatprep.subr.bf16.mxu0 0
    %461 = vmatpush1.bf16.msra.mxu0 %v443
    %462 = vmatprep.subr.bf16.mxu0 0
    %463 = vmatpush1.bf16.msra.mxu0 %v444
    %464 = vmatprep.subr.bf16.mxu0 0
    %465 = vmatpush1.bf16.msra.mxu0 %v445
    %466 = vmatprep.subr.bf16.mxu0 0
    %467 = vmatpush1.bf16.msra.mxu0 %v446
    %468 = vmatprep.subr.bf16.mxu0 0
    %469 = vmatpush1.bf16.msra.mxu0 %v447
    %470 = vmatprep.subr.bf16.mxu0 0
    %471 = vmatpush1.bf16.msra.mxu0 %v448
    %472 = vmatprep.subr.bf16.mxu0 0
    %473 = vmatpush1.bf16.msra.mxu0 %v449
    %474 = vmatprep.subr.bf16.mxu0 0
    %475 = vmatpush1.bf16.msra.mxu0 0
    %476 = vmatprep.subr.bf16.mxu0 0
    %477 = vmatpush1.bf16.msra.mxu0 0
    %478 = vmatprep.subr.bf16.mxu0 0
    %479 = vmatpush1.bf16.msra.mxu0 0
    %480 = vmatprep.subr.bf16.mxu0 0
    %481 = vmatpush1.bf16.msra.mxu0 0
    %482 = vmatprep.subr.bf16.mxu0 0
    %483 = vmatpush1.bf16.msra.mxu0 0
    %484 = vmatprep.subr.bf16.mxu0 0
    %485 = vmatpush1.bf16.msra.mxu0 0
    %486 = vmatprep.subr.bf16.mxu0 0
    %487 = vmatpush1.bf16.msra.mxu0 0
    %488 = vmatprep.subr.bf16.mxu0 0
    %489 = vmatpush1.bf16.msra.mxu0 0
    %490 = vmatprep.mubr.bf16.mxu0 0
    %491 = vmatmul.mubr.bf16.gmra.mrb[0].mxu0 %v387
    %v492 = vpop.f32.mrb[0].mxu0
    %v493 = vadd.f32 %v409, %v492
    %v494 = vpop.f32.mrb[0].mxu0
    %v495 = vpop.f32.mrb[0].mxu0
    %v496 = vpop.f32.mrb[0].mxu0
    %497 = vdwg.mxu0
    %v498 = vpack.c.bf16 %v493, %v493
    %s499 = scalar_lea.vmem [#allocation5], 256
    %v500 = vld [vmem:[%s499] sm:$0xf]
    %v501 = vld [vmem:[%s499 + $0x4] sm:$0xf]
    %v502 = vld [vmem:[%s499 + $0x8] sm:$0xf]
    %v503 = vld [vmem:[%s499 + $0xc] sm:$0xf]
    %v504 = vld [vmem:[%s499 + $0x10] sm:$0xf]
    %v505 = vld [vmem:[%s499 + $0x14] sm:$0xf]
    %v506 = vld [vmem:[%s499 + $0x18] sm:$0xf]
    %v507 = vld [vmem:[%s499 + $0x1c] sm:$0xf]
    %v508 = vld [vmem:[%s499 + $0x20] sm:$0xf]
    %v509 = vld [vmem:[%s499 + $0x24] sm:$0xf]
    %v510 = vld [vmem:[%s499 + $0x28] sm:$0xf]
    %v511 = vld [vmem:[%s499 + $0x2c] sm:$0xf]
    %v512 = vld [vmem:[%s499 + $0x30] sm:$0xf]
    %v513 = vld [vmem:[%s499 + $0x34] sm:$0xf]
    %v514 = vld [vmem:[%s499 + $0x38] sm:$0xf]
    %v515 = vld [vmem:[%s499 + $0x3c] sm:$0xf]
    %v516 = vld [vmem:[#allocation7 + $0x4] sm:$0x1]
    %v517 = vlaneseq
    %v518 = vshrl.u32 %v517, 7
    %v519 = vsub.s32 0, %v518
    %v520 = vrot.slane %v516, %v519
    %v537 = vunpack.c.l.b16 %v500
    %v538 = vunpack.c.l.b16 %v501
    %v539 = vunpack.c.l.b16 %v502
    %v540 = vunpack.c.l.b16 %v503
    %v541 = vunpack.c.l.b16 %v504
    %v542 = vunpack.c.l.b16 %v505
    %v543 = vunpack.c.l.b16 %v506
    %v544 = vunpack.c.l.b16 %v507
    %v545 = vunpack.c.l.b16 %v508
    %v546 = vunpack.c.l.b16 %v509
    %v547 = vunpack.c.l.b16 %v510
    %v548 = vunpack.c.l.b16 %v511
    %v549 = vunpack.c.l.b16 %v512
    %v550 = vunpack.c.l.b16 %v513
    %v551 = vunpack.c.l.b16 %v514
    %v552 = vunpack.c.l.b16 %v515
    %v553 = vpack.c.b16 %v538, %v537
    %v554 = vpack.c.b16 %v540, %v539
    %v555 = vpack.c.b16 %v542, %v541
    %v556 = vpack.c.b16 %v544, %v543
    %v557 = vpack.c.b16 %v546, %v545
    %v558 = vpack.c.b16 %v548, %v547
    %v559 = vpack.c.b16 %v550, %v549
    %v560 = vpack.c.b16 %v552, %v551
    %569 = vmatprep.subr.bf16.mxu0 0
    %570 = vmatpush1.bf16.msra.mxu0 %v553
    %571 = vmatprep.subr.bf16.mxu0 0
    %572 = vmatpush1.bf16.msra.mxu0 %v554
    %573 = vmatprep.subr.bf16.mxu0 0
    %574 = vmatpush1.bf16.msra.mxu0 %v555
    %575 = vmatprep.subr.bf16.mxu0 0
    %576 = vmatpush1.bf16.msra.mxu0 %v556
    %577 = vmatprep.subr.bf16.mxu0 0
    %578 = vmatpush1.bf16.msra.mxu0 %v557
    %579 = vmatprep.subr.bf16.mxu0 0
    %580 = vmatpush1.bf16.msra.mxu0 %v558
    %581 = vmatprep.subr.bf16.mxu0 0
    %582 = vmatpush1.bf16.msra.mxu0 %v559
    %583 = vmatprep.subr.bf16.mxu0 0
    %584 = vmatpush1.bf16.msra.mxu0 %v560
    %585 = vmatprep.subr.bf16.mxu0 0
    %586 = vmatpush1.bf16.msra.mxu0 0
    %587 = vmatprep.subr.bf16.mxu0 0
    %588 = vmatpush1.bf16.msra.mxu0 0
    %589 = vmatprep.subr.bf16.mxu0 0
    %590 = vmatpush1.bf16.msra.mxu0 0
    %591 = vmatprep.subr.bf16.mxu0 0
    %592 = vmatpush1.bf16.msra.mxu0 0
    %593 = vmatprep.subr.bf16.mxu0 0
    %594 = vmatpush1.bf16.msra.mxu0 0
    %595 = vmatprep.subr.bf16.mxu0 0
    %596 = vmatpush1.bf16.msra.mxu0 0
    %597 = vmatprep.subr.bf16.mxu0 0
    %598 = vmatpush1.bf16.msra.mxu0 0
    %599 = vmatprep.subr.bf16.mxu0 0
    %600 = vmatpush1.bf16.msra.mxu0 0
    %601 = vmatprep.mubr.bf16.mxu0 0
    %602 = vmatmul.mubr.bf16.gmra.mrb[0].mxu0 %v498
    %v603 = vpop.f32.mrb[0].mxu0
    %v604 = vadd.f32 %v520, %v603
    %v605 = vpop.f32.mrb[0].mxu0
    %v606 = vpop.f32.mrb[0].mxu0
    %v607 = vpop.f32.mrb[0].mxu0
    %608 = vdwg.mxu0
    %v609 = vpack.c.bf16 %v604, %v604
    %s610 = scalar_lea.vmem [#allocation5], 320
    %v611 = vld [vmem:[%s610] sm:$0xf]
    %v612 = vld [vmem:[%s610 + $0x4] sm:$0xf]
    %v613 = vld [vmem:[%s610 + $0x8] sm:$0xf]
    %v614 = vld [vmem:[%s610 + $0xc] sm:$0xf]
    %v615 = vld [vmem:[%s610 + $0x10] sm:$0xf]
    %v616 = vld [vmem:[%s610 + $0x14] sm:$0xf]
    %v617 = vld [vmem:[%s610 + $0x18] sm:$0xf]
    %v618 = vld [vmem:[%s610 + $0x1c] sm:$0xf]
    %v619 = vld [vmem:[%s610 + $0x20] sm:$0xf]
    %v620 = vld [vmem:[%s610 + $0x24] sm:$0xf]
    %v621 = vld [vmem:[%s610 + $0x28] sm:$0xf]
    %v622 = vld [vmem:[%s610 + $0x2c] sm:$0xf]
    %v623 = vld [vmem:[%s610 + $0x30] sm:$0xf]
    %v624 = vld [vmem:[%s610 + $0x34] sm:$0xf]
    %v625 = vld [vmem:[%s610 + $0x38] sm:$0xf]
    %v626 = vld [vmem:[%s610 + $0x3c] sm:$0xf]
    %v627 = vld [vmem:[#allocation7 + $0x5] sm:$0x1]
    %v628 = vlaneseq
    %v629 = vshrl.u32 %v628, 7
    %v630 = vsub.s32 0, %v629
    %v631 = vrot.slane %v627, %v630
    %v648 = vunpack.c.l.b16 %v611
    %v649 = vunpack.c.l.b16 %v612
    %v650 = vunpack.c.l.b16 %v613
    %v651 = vunpack.c.l.b16 %v614
    %v652 = vunpack.c.l.b16 %v615
    %v653 = vunpack.c.l.b16 %v616
    %v654 = vunpack.c.l.b16 %v617
    %v655 = vunpack.c.l.b16 %v618
    %v656 = vunpack.c.l.b16 %v619
    %v657 = vunpack.c.l.b16 %v620
    %v658 = vunpack.c.l.b16 %v621
    %v659 = vunpack.c.l.b16 %v622
    %v660 = vunpack.c.l.b16 %v623
    %v661 = vunpack.c.l.b16 %v624
    %v662 = vunpack.c.l.b16 %v625
    %v663 = vunpack.c.l.b16 %v626
    %v664 = vpack.c.b16 %v649, %v648
    %v665 = vpack.c.b16 %v651, %v650
    %v666 = vpack.c.b16 %v653, %v652
    %v667 = vpack.c.b16 %v655, %v654
    %v668 = vpack.c.b16 %v657, %v656
    %v669 = vpack.c.b16 %v659, %v658
    %v670 = vpack.c.b16 %v661, %v660
    %v671 = vpack.c.b16 %v663, %v662
    %680 = vmatprep.subr.bf16.mxu0 0
    %681 = vmatpush1.bf16.msra.mxu0 %v664
    %682 = vmatprep.subr.bf16.mxu0 0
    %683 = vmatpush1.bf16.msra.mxu0 %v665
    %684 = vmatprep.subr.bf16.mxu0 0
    %685 = vmatpush1.bf16.msra.mxu0 %v666
    %686 = vmatprep.subr.bf16.mxu0 0
    %687 = vmatpush1.bf16.msra.mxu0 %v667
    %688 = vmatprep.subr.bf16.mxu0 0
    %689 = vmatpush1.bf16.msra.mxu0 %v668
    %690 = vmatprep.subr.bf16.mxu0 0
    %691 = vmatpush1.bf16.msra.mxu0 %v669
    %692 = vmatprep.subr.bf16.mxu0 0
    %693 = vmatpush1.bf16.msra.mxu0 %v670
    %694 = vmatprep.subr.bf16.mxu0 0
    %695 = vmatpush1.bf16.msra.mxu0 %v671
    %696 = vmatprep.subr.bf16.mxu0 0
    %697 = vmatpush1.bf16.msra.mxu0 0
    %698 = vmatprep.subr.bf16.mxu0 0
    %699 = vmatpush1.bf16.msra.mxu0 0
    %700 = vmatprep.subr.bf16.mxu0 0
    %701 = vmatpush1.bf16.msra.mxu0 0
    %702 = vmatprep.subr.bf16.mxu0 0
    %703 = vmatpush1.bf16.msra.mxu0 0
    %704 = vmatprep.subr.bf16.mxu0 0
    %705 = vmatpush1.bf16.msra.mxu0 0
    %706 = vmatprep.subr.bf16.mxu0 0
    %707 = vmatpush1.bf16.msra.mxu0 0
    %708 = vmatprep.subr.bf16.mxu0 0
    %709 = vmatpush1.bf16.msra.mxu0 0
    %710 = vmatprep.subr.bf16.mxu0 0
    %711 = vmatpush1.bf16.msra.mxu0 0
    %712 = vmatprep.mubr.bf16.mxu0 0
    %713 = vmatmul.mubr.bf16.gmra.mrb[0].mxu0 %v609
    %v714 = vpop.f32.mrb[0].mxu0
    %v715 = vadd.f32 %v631, %v714
    %v716 = vpop.f32.mrb[0].mxu0
    %v717 = vpop.f32.mrb[0].mxu0
    %v718 = vpop.f32.mrb[0].mxu0
    %719 = vdwg.mxu0
    %v720 = vpack.c.bf16 %v715, %v715
    %s721 = scalar_lea.vmem [#allocation5], 384
    %v722 = vld [vmem:[%s721] sm:$0xf]
    %v723 = vld [vmem:[%s721 + $0x4] sm:$0xf]
    %v724 = vld [vmem:[%s721 + $0x8] sm:$0xf]
    %v725 = vld [vmem:[%s721 + $0xc] sm:$0xf]
    %v726 = vld [vmem:[%s721 + $0x10] sm:$0xf]
    %v727 = vld [vmem:[%s721 + $0x14] sm:$0xf]
    %v728 = vld [vmem:[%s721 + $0x18] sm:$0xf]
    %v729 = vld [vmem:[%s721 + $0x1c] sm:$0xf]
    %v730 = vld [vmem:[%s721 + $0x20] sm:$0xf]
    %v731 = vld [vmem:[%s721 + $0x24] sm:$0xf]
    %v732 = vld [vmem:[%s721 + $0x28] sm:$0xf]
    %v733 = vld [vmem:[%s721 + $0x2c] sm:$0xf]
    %v734 = vld [vmem:[%s721 + $0x30] sm:$0xf]
    %v735 = vld [vmem:[%s721 + $0x34] sm:$0xf]
    %v736 = vld [vmem:[%s721 + $0x38] sm:$0xf]
    %v737 = vld [vmem:[%s721 + $0x3c] sm:$0xf]
    %v738 = vld [vmem:[#allocation7 + $0x6] sm:$0x1]
    %v739 = vlaneseq
    %v740 = vshrl.u32 %v739, 7
    %v741 = vsub.s32 0, %v740
    %v742 = vrot.slane %v738, %v741
    %v759 = vunpack.c.l.b16 %v722
    %v760 = vunpack.c.l.b16 %v723
    %v761 = vunpack.c.l.b16 %v724
    %v762 = vunpack.c.l.b16 %v725
    %v763 = vunpack.c.l.b16 %v726
    %v764 = vunpack.c.l.b16 %v727
    %v765 = vunpack.c.l.b16 %v728
    %v766 = vunpack.c.l.b16 %v729
    %v767 = vunpack.c.l.b16 %v730
    %v768 = vunpack.c.l.b16 %v731
    %v769 = vunpack.c.l.b16 %v732
    %v770 = vunpack.c.l.b16 %v733
    %v771 = vunpack.c.l.b16 %v734
    %v772 = vunpack.c.l.b16 %v735
    %v773 = vunpack.c.l.b16 %v736
    %v774 = vunpack.c.l.b16 %v737
    %v775 = vpack.c.b16 %v760, %v759
    %v776 = vpack.c.b16 %v762, %v761
    %v777 = vpack.c.b16 %v764, %v763
    %v778 = vpack.c.b16 %v766, %v765
    %v779 = vpack.c.b16 %v768, %v767
    %v780 = vpack.c.b16 %v770, %v769
    %v781 = vpack.c.b16 %v772, %v771
    %v782 = vpack.c.b16 %v774, %v773
    %791 = vmatprep.subr.bf16.mxu0 0
    %792 = vmatpush1.bf16.msra.mxu0 %v775
    %793 = vmatprep.subr.bf16.mxu0 0
    %794 = vmatpush1.bf16.msra.mxu0 %v776
    %795 = vmatprep.subr.bf16.mxu0 0
    %796 = vmatpush1.bf16.msra.mxu0 %v777
    %797 = vmatprep.subr.bf16.mxu0 0
    %798 = vmatpush1.bf16.msra.mxu0 %v778
    %799 = vmatprep.subr.bf16.mxu0 0
    %800 = vmatpush1.bf16.msra.mxu0 %v779
    %801 = vmatprep.subr.bf16.mxu0 0
    %802 = vmatpush1.bf16.msra.mxu0 %v780
    %803 = vmatprep.subr.bf16.mxu0 0
    %804 = vmatpush1.bf16.msra.mxu0 %v781
    %805 = vmatprep.subr.bf16.mxu0 0
    %806 = vmatpush1.bf16.msra.mxu0 %v782
    %807 = vmatprep.subr.bf16.mxu0 0
    %808 = vmatpush1.bf16.msra.mxu0 0
    %809 = vmatprep.subr.bf16.mxu0 0
    %810 = vmatpush1.bf16.msra.mxu0 0
    %811 = vmatprep.subr.bf16.mxu0 0
    %812 = vmatpush1.bf16.msra.mxu0 0
    %813 = vmatprep.subr.bf16.mxu0 0
    %814 = vmatpush1.bf16.msra.mxu0 0
    %815 = vmatprep.subr.bf16.mxu0 0
    %816 = vmatpush1.bf16.msra.mxu0 0
    %817 = vmatprep.subr.bf16.mxu0 0
    %818 = vmatpush1.bf16.msra.mxu0 0
    %819 = vmatprep.subr.bf16.mxu0 0
    %820 = vmatpush1.bf16.msra.mxu0 0
    %821 = vmatprep.subr.bf16.mxu0 0
    %822 = vmatpush1.bf16.msra.mxu0 0
    %823 = vmatprep.mubr.bf16.mxu0 0
    %824 = vmatmul.mubr.bf16.gmra.mrb[0].mxu0 %v720
    %v825 = vpop.f32.mrb[0].mxu0
    %v826 = vadd.f32 %v742, %v825
    %v827 = vpop.f32.mrb[0].mxu0
    %v828 = vpop.f32.mrb[0].mxu0
    %v829 = vpop.f32.mrb[0].mxu0
    %830 = vdwg.mxu0
    %v831 = vpack.c.bf16 %v826, %v826
    %s832 = scalar_lea.vmem [#allocation5], 448
    %v833 = vld [vmem:[%s832] sm:$0xf]
    %v834 = vld [vmem:[%s832 + $0x4] sm:$0xf]
    %v835 = vld [vmem:[%s832 + $0x8] sm:$0xf]
    %v836 = vld [vmem:[%s832 + $0xc] sm:$0xf]
    %v837 = vld [vmem:[%s832 + $0x10] sm:$0xf]
    %v838 = vld [vmem:[%s832 + $0x14] sm:$0xf]
    %v839 = vld [vmem:[%s832 + $0x18] sm:$0xf]
    %v840 = vld [vmem:[%s832 + $0x1c] sm:$0xf]
    %v841 = vld [vmem:[%s832 + $0x20] sm:$0xf]
    %v842 = vld [vmem:[%s832 + $0x24] sm:$0xf]
    %v843 = vld [vmem:[%s832 + $0x28] sm:$0xf]
    %v844 = vld [vmem:[%s832 + $0x2c] sm:$0xf]
    %v845 = vld [vmem:[%s832 + $0x30] sm:$0xf]
    %v846 = vld [vmem:[%s832 + $0x34] sm:$0xf]
    %v847 = vld [vmem:[%s832 + $0x38] sm:$0xf]
    %v848 = vld [vmem:[%s832 + $0x3c] sm:$0xf]
    %v849 = vld [vmem:[#allocation7 + $0x7] sm:$0x1]
    %v850 = vlaneseq
    %v851 = vshrl.u32 %v850, 7
    %v852 = vsub.s32 0, %v851
    %v853 = vrot.slane %v849, %v852
    %v870 = vunpack.c.l.b16 %v833
    %v871 = vunpack.c.l.b16 %v834
    %v872 = vunpack.c.l.b16 %v835
    %v873 = vunpack.c.l.b16 %v836
    %v874 = vunpack.c.l.b16 %v837
    %v875 = vunpack.c.l.b16 %v838
    %v876 = vunpack.c.l.b16 %v839
    %v877 = vunpack.c.l.b16 %v840
    %v878 = vunpack.c.l.b16 %v841
    %v879 = vunpack.c.l.b16 %v842
    %v880 = vunpack.c.l.b16 %v843
    %v881 = vunpack.c.l.b16 %v844
    %v882 = vunpack.c.l.b16 %v845
    %v883 = vunpack.c.l.b16 %v846
    %v884 = vunpack.c.l.b16 %v847
    %v885 = vunpack.c.l.b16 %v848
    %v886 = vpack.c.b16 %v871, %v870
    %v887 = vpack.c.b16 %v873, %v872
    %v888 = vpack.c.b16 %v875, %v874
    %v889 = vpack.c.b16 %v877, %v876
    %v890 = vpack.c.b16 %v879, %v878
    %v891 = vpack.c.b16 %v881, %v880
    %v892 = vpack.c.b16 %v883, %v882
    %v893 = vpack.c.b16 %v885, %v884
    %902 = vmatprep.subr.bf16.mxu0 0
    %903 = vmatpush1.bf16.msra.mxu0 %v886
    %904 = vmatprep.subr.bf16.mxu0 0
    %905 = vmatpush1.bf16.msra.mxu0 %v887
    %906 = vmatprep.subr.bf16.mxu0 0
    %907 = vmatpush1.bf16.msra.mxu0 %v888
    %908 = vmatprep.subr.bf16.mxu0 0
    %909 = vmatpush1.bf16.msra.mxu0 %v889
    %910 = vmatprep.subr.bf16.mxu0 0
    %911 = vmatpush1.bf16.msra.mxu0 %v890
    %912 = vmatprep.subr.bf16.mxu0 0
    %913 = vmatpush1.bf16.msra.mxu0 %v891
    %914 = vmatprep.subr.bf16.mxu0 0
    %915 = vmatpush1.bf16.msra.mxu0 %v892
    %916 = vmatprep.subr.bf16.mxu0 0
    %917 = vmatpush1.bf16.msra.mxu0 %v893
    %918 = vmatprep.subr.bf16.mxu0 0
    %919 = vmatpush1.bf16.msra.mxu0 0
    %920 = vmatprep.subr.bf16.mxu0 0
    %921 = vmatpush1.bf16.msra.mxu0 0
    %922 = vmatprep.subr.bf16.mxu0 0
    %923 = vmatpush1.bf16.msra.mxu0 0
    %924 = vmatprep.subr.bf16.mxu0 0
    %925 = vmatpush1.bf16.msra.mxu0 0
    %926 = vmatprep.subr.bf16.mxu0 0
    %927 = vmatpush1.bf16.msra.mxu0 0
    %928 = vmatprep.subr.bf16.mxu0 0
    %929 = vmatpush1.bf16.msra.mxu0 0
    %930 = vmatprep.subr.bf16.mxu0 0
    %931 = vmatpush1.bf16.msra.mxu0 0
    %932 = vmatprep.subr.bf16.mxu0 0
    %933 = vmatpush1.bf16.msra.mxu0 0
    %934 = vmatprep.mubr.bf16.mxu0 0
    %935 = vmatmul.mubr.bf16.gmra.mrb[0].mxu0 %v831
    %v936 = vpop.f32.mrb[0].mxu0
    %v937 = vadd.f32 %v853, %v936
    %v938 = vpop.f32.mrb[0].mxu0
    %v939 = vpop.f32.mrb[0].mxu0
    %v940 = vpop.f32.mrb[0].mxu0
    %941 = vdwg.mxu0
    %v942 = vpack.c.bf16 %v937, %v937
    %s943 = scalar_lea.vmem [#allocation5], 512
    %v944 = vld [vmem:[%s943] sm:$0xf]
    %v945 = vld [vmem:[%s943 + $0x4] sm:$0xf]
    %v946 = vld [vmem:[%s943 + $0x8] sm:$0xf]
    %v947 = vld [vmem:[%s943 + $0xc] sm:$0xf]
    %v948 = vld [vmem:[%s943 + $0x10] sm:$0xf]
    %v949 = vld [vmem:[%s943 + $0x14] sm:$0xf]
    %v950 = vld [vmem:[%s943 + $0x18] sm:$0xf]
    %v951 = vld [vmem:[%s943 + $0x1c] sm:$0xf]
    %v952 = vld [vmem:[%s943 + $0x20] sm:$0xf]
    %v953 = vld [vmem:[%s943 + $0x24] sm:$0xf]
    %v954 = vld [vmem:[%s943 + $0x28] sm:$0xf]
    %v955 = vld [vmem:[%s943 + $0x2c] sm:$0xf]
    %v956 = vld [vmem:[%s943 + $0x30] sm:$0xf]
    %v957 = vld [vmem:[%s943 + $0x34] sm:$0xf]
    %v958 = vld [vmem:[%s943 + $0x38] sm:$0xf]
    %v959 = vld [vmem:[%s943 + $0x3c] sm:$0xf]
    %v960 = vld [vmem:[#allocation7 + $0x8] sm:$0x1]
    %v961 = vlaneseq
    %v962 = vshrl.u32 %v961, 7
    %v963 = vsub.s32 0, %v962
    %v964 = vrot.slane %v960, %v963
    %v981 = vunpack.c.l.b16 %v944
    %v982 = vunpack.c.l.b16 %v945
    %v983 = vunpack.c.l.b16 %v946
    %v984 = vunpack.c.l.b16 %v947
    %v985 = vunpack.c.l.b16 %v948
    %v986 = vunpack.c.l.b16 %v949
    %v987 = vunpack.c.l.b16 %v950
    %v988 = vunpack.c.l.b16 %v951
    %v989 = vunpack.c.l.b16 %v952
    %v990 = vunpack.c.l.b16 %v953
    %v991 = vunpack.c.l.b16 %v954
    %v992 = vunpack.c.l.b16 %v955
    %v993 = vunpack.c.l.b16 %v956
    %v994 = vunpack.c.l.b16 %v957
    %v995 = vunpack.c.l.b16 %v958
    %v996 = vunpack.c.l.b16 %v959
    %v997 = vpack.c.b16 %v982, %v981
    %v998 = vpack.c.b16 %v984, %v983
    %v999 = vpack.c.b16 %v986, %v985
    %v1000 = vpack.c.b16 %v988, %v987
    %v1001 = vpack.c.b16 %v990, %v989
    %v1002 = vpack.c.b16 %v992, %v991
    %v1003 = vpack.c.b16 %v994, %v993
    %v1004 = vpack.c.b16 %v996, %v995
    %1013 = vmatprep.subr.bf16.mxu0 0
    %1014 = vmatpush1.bf16.msra.mxu0 %v997
    %1015 = vmatprep.subr.bf16.mxu0 0
    %1016 = vmatpush1.bf16.msra.mxu0 %v998
    %1017 = vmatprep.subr.bf16.mxu0 0
    %1018 = vmatpush1.bf16.msra.mxu0 %v999
    %1019 = vmatprep.subr.bf16.mxu0 0
    %1020 = vmatpush1.bf16.msra.mxu0 %v1000
    %1021 = vmatprep.subr.bf16.mxu0 0
    %1022 = vmatpush1.bf16.msra.mxu0 %v1001
    %1023 = vmatprep.subr.bf16.mxu0 0
    %1024 = vmatpush1.bf16.msra.mxu0 %v1002
    %1025 = vmatprep.subr.bf16.mxu0 0
    %1026 = vmatpush1.bf16.msra.mxu0 %v1003
    %1027 = vmatprep.subr.bf16.mxu0 0
    %1028 = vmatpush1.bf16.msra.mxu0 %v1004
    %1029 = vmatprep.subr.bf16.mxu0 0
    %1030 = vmatpush1.bf16.msra.mxu0 0
    %1031 = vmatprep.subr.bf16.mxu0 0
    %1032 = vmatpush1.bf16.msra.mxu0 0
    %1033 = vmatprep.subr.bf16.mxu0 0
    %1034 = vmatpush1.bf16.msra.mxu0 0
    %1035 = vmatprep.subr.bf16.mxu0 0
    %1036 = vmatpush1.bf16.msra.mxu0 0
    %1037 = vmatprep.subr.bf16.mxu0 0
    %1038 = vmatpush1.bf16.msra.mxu0 0
    %1039 = vmatprep.subr.bf16.mxu0 0
    %1040 = vmatpush1.bf16.msra.mxu0 0
    %1041 = vmatprep.subr.bf16.mxu0 0
    %1042 = vmatpush1.bf16.msra.mxu0 0
    %1043 = vmatprep.subr.bf16.mxu0 0
    %1044 = vmatpush1.bf16.msra.mxu0 0
    %1045 = vmatprep.mubr.bf16.mxu0 0
    %1046 = vmatmul.mubr.bf16.gmra.mrb[0].mxu0 %v942
    %v1047 = vpop.f32.mrb[0].mxu0
    %v1048 = vadd.f32 %v964, %v1047
    %v1049 = vpop.f32.mrb[0].mxu0
    %v1050 = vpop.f32.mrb[0].mxu0
    %v1051 = vpop.f32.mrb[0].mxu0
    %1052 = vdwg.mxu0
    %v1053 = vpack.c.bf16 %v1048, %v1048
    %s1054 = scalar_lea.vmem [#allocation5], 576
    %v1055 = vld [vmem:[%s1054] sm:$0xf]
    %v1056 = vld [vmem:[%s1054 + $0x4] sm:$0xf]
    %v1057 = vld [vmem:[%s1054 + $0x8] sm:$0xf]
    %v1058 = vld [vmem:[%s1054 + $0xc] sm:$0xf]
    %v1059 = vld [vmem:[%s1054 + $0x10] sm:$0xf]
    %v1060 = vld [vmem:[%s1054 + $0x14] sm:$0xf]
    %v1061 = vld [vmem:[%s1054 + $0x18] sm:$0xf]
    %v1062 = vld [vmem:[%s1054 + $0x1c] sm:$0xf]
    %v1063 = vld [vmem:[%s1054 + $0x20] sm:$0xf]
    %v1064 = vld [vmem:[%s1054 + $0x24] sm:$0xf]
    %v1065 = vld [vmem:[%s1054 + $0x28] sm:$0xf]
    %v1066 = vld [vmem:[%s1054 + $0x2c] sm:$0xf]
    %v1067 = vld [vmem:[%s1054 + $0x30] sm:$0xf]
    %v1068 = vld [vmem:[%s1054 + $0x34] sm:$0xf]
    %v1069 = vld [vmem:[%s1054 + $0x38] sm:$0xf]
    %v1070 = vld [vmem:[%s1054 + $0x3c] sm:$0xf]
    %v1071 = vld [vmem:[#allocation7 + $0x9] sm:$0x1]
    %v1072 = vlaneseq
    %v1073 = vshrl.u32 %v1072, 7
    %v1074 = vsub.s32 0, %v1073
    %v1075 = vrot.slane %v1071, %v1074
    %v1092 = vunpack.c.l.b16 %v1055
    %v1093 = vunpack.c.l.b16 %v1056
    %v1094 = vunpack.c.l.b16 %v1057
    %v1095 = vunpack.c.l.b16 %v1058
    %v1096 = vunpack.c.l.b16 %v1059
    %v1097 = vunpack.c.l.b16 %v1060
    %v1098 = vunpack.c.l.b16 %v1061
    %v1099 = vunpack.c.l.b16 %v1062
    %v1100 = vunpack.c.l.b16 %v1063
    %v1101 = vunpack.c.l.b16 %v1064
    %v1102 = vunpack.c.l.b16 %v1065
    %v1103 = vunpack.c.l.b16 %v1066
    %v1104 = vunpack.c.l.b16 %v1067
    %v1105 = vunpack.c.l.b16 %v1068
    %v1106 = vunpack.c.l.b16 %v1069
    %v1107 = vunpack.c.l.b16 %v1070
    %v1108 = vpack.c.b16 %v1093, %v1092
    %v1109 = vpack.c.b16 %v1095, %v1094
    %v1110 = vpack.c.b16 %v1097, %v1096
    %v1111 = vpack.c.b16 %v1099, %v1098
    %v1112 = vpack.c.b16 %v1101, %v1100
    %v1113 = vpack.c.b16 %v1103, %v1102
    %v1114 = vpack.c.b16 %v1105, %v1104
    %v1115 = vpack.c.b16 %v1107, %v1106
    %1124 = vmatprep.subr.bf16.mxu0 0
    %1125 = vmatpush1.bf16.msra.mxu0 %v1108
    %1126 = vmatprep.subr.bf16.mxu0 0
    %1127 = vmatpush1.bf16.msra.mxu0 %v1109
    %1128 = vmatprep.subr.bf16.mxu0 0
    %1129 = vmatpush1.bf16.msra.mxu0 %v1110
    %1130 = vmatprep.subr.bf16.mxu0 0
    %1131 = vmatpush1.bf16.msra.mxu0 %v1111
    %1132 = vmatprep.subr.bf16.mxu0 0
    %1133 = vmatpush1.bf16.msra.mxu0 %v1112
    %1134 = vmatprep.subr.bf16.mxu0 0
    %1135 = vmatpush1.bf16.msra.mxu0 %v1113
    %1136 = vmatprep.subr.bf16.mxu0 0
    %1137 = vmatpush1.bf16.msra.mxu0 %v1114
    %1138 = vmatprep.subr.bf16.mxu0 0
    %1139 = vmatpush1.bf16.msra.mxu0 %v1115
    %1140 = vmatprep.subr.bf16.mxu0 0
    %1141 = vmatpush1.bf16.msra.mxu0 0
    %1142 = vmatprep.subr.bf16.mxu0 0
    %1143 = vmatpush1.bf16.msra.mxu0 0
    %1144 = vmatprep.subr.bf16.mxu0 0
    %1145 = vmatpush1.bf16.msra.mxu0 0
    %1146 = vmatprep.subr.bf16.mxu0 0
    %1147 = vmatpush1.bf16.msra.mxu0 0
    %1148 = vmatprep.subr.bf16.mxu0 0
    %1149 = vmatpush1.bf16.msra.mxu0 0
    %1150 = vmatprep.subr.bf16.mxu0 0
    %1151 = vmatpush1.bf16.msra.mxu0 0
    %1152 = vmatprep.subr.bf16.mxu0 0
    %1153 = vmatpush1.bf16.msra.mxu0 0
    %1154 = vmatprep.subr.bf16.mxu0 0
    %1155 = vmatpush1.bf16.msra.mxu0 0
    %1156 = vmatprep.mubr.bf16.mxu0 0
    %1157 = vmatmul.mubr.bf16.gmra.mrb[0].mxu0 %v1053
    %v1158 = vpop.f32.mrb[0].mxu0
    %v1159 = vadd.f32 %v1075, %v1158
    %v1160 = vpop.f32.mrb[0].mxu0
    %v1161 = vpop.f32.mrb[0].mxu0
    %v1162 = vpop.f32.mrb[0].mxu0
    %1163 = vdwg.mxu0
    %1164 = vst [vmem:[#allocation8] sm:$0xff] %v1159
    // Predicated region
    $region26: #{tpu_custom_call.1} parent=1 // pred_check
      _
    $region27: #{tpu_custom_call.1} parent=1 // pred_check_branch
      %1166 = sbr.rel (0) target = $region29
    $region28: #{tpu_custom_call.1} parent=1 // pred_region
      %s1168 = ssub.s32 128, 128
      %1169 = vsyncadd [#allocation4], %s1168
      %s1171 = sshll.u32 [#allocation8], 4
      %s1172 = int_to_ptr.vmem [resolvable:$true] %s1171
      %1174 = dma.vmem_to_hbm [thread:$0]  %s1172, 128, %s3, [#allocation4]
    $region29: #{tpu_custom_call.1} parent=1 // pred_fallthru
      _
    // Predicated region
    $region30: #{tpu_custom_call.1} parent=1 // pred_check
      _
    $region31: #{tpu_custom_call.1} parent=1 // pred_check_branch
      %1176 = sbr.rel (0) target = $region33
    $region32: #{tpu_custom_call.1} parent=1 // pred_region
      %1177 = dma.done [#allocation4], 128
    $region33: #{tpu_custom_call.1} parent=1 // pred_fallthru
      _
    %1178 = vsyncpa [#allocation3], 1
    %1179 = vsyncpa [#allocation6], 1
    %1180 = vsyncpa [#allocation4], 1

</llo_original>
